<compile_context>
chip_gen: v7x
topology: tpu7x:2x2x1
jax: 0.10.0
libtpu: 0.0.40
codegen_flags: <defaults>
</compile_context>

<pallas_src>
import math
import functools

import numpy as np
import jax
import jax.numpy as jnp
from jax import lax
from jax.experimental import pallas as pl
from jax.experimental.pallas import tpu as pltpu


# ----------------------------- activations ---------------------------------

def _gelu(x):
    # tanh-approx GeLU (matches the Triton gelu kernel used by xformers)
    c = math.sqrt(2.0 / math.pi)
    return 0.5 * x * (1.0 + jnp.tanh(c * (x + 0.044715 * x * x * x)))


def _relu(x):
    return jnp.maximum(x, 0.0)


def _squared_relu(x):
    r = jnp.maximum(x, 0.0)
    return r * r


def _leaky_relu(x):
    return jnp.where(x >= 0, x, 0.01 * x)


_ACTIVATIONS = {
    None: lambda x: x,
    "gelu": _gelu,
    "relu": _relu,
    "squared_relu": _squared_relu,
    "leaky_relu": _leaky_relu,
}


# ------------------------------- kernels ------------------------------------

def _epilogue(y_f32, b_ref, act_fn, o_ref):
    if b_ref is not None:
        y_f32 = y_f32 + b_ref[...].astype(jnp.float32)   # bias broadcast over rows
    o_ref[...] = act_fn(y_f32).astype(o_ref.dtype)


def _partial_matmul(x_ref, w_ref):
    # x tile: (tm, tk) bf16, w tile: (tn, tk) bf16 (nn.Linear layout, no
    # wrapper transpose).  Contract the last dim of both -> (tm, tn) f32.
    return lax.dot_general(
        x_ref[...],
        w_ref[...],
        dimension_numbers=(((1,), (1,)), ((), ())),
        preferred_element_type=jnp.float32,
    )


def _make_single_k_kernel(act_fn, has_bias):
    """Whole contraction fits in one K tile: 2-D grid, no scratch accumulator."""

    def kernel(*refs):
        if has_bias:
            x_ref, w_ref, b_ref, o_ref = refs
        else:
            x_ref, w_ref, o_ref = refs
            b_ref = None
        _epilogue(_partial_matmul(x_ref, w_ref), b_ref, act_fn, o_ref)

    return kernel


def _make_multi_k_kernel(act_fn, has_bias):
    """K walked on grid axis 2; f32 VMEM accumulator, fused epilogue on last step."""

    def kernel(*refs):
        if has_bias:
            x_ref, w_ref, b_ref, o_ref, acc_ref = refs
        else:
            x_ref, w_ref, o_ref, acc_ref = refs
            b_ref = None

        k = pl.program_id(2)
        partial = _partial_matmul(x_ref, w_ref)

        @pl.when(k == 0)
        def _():
            acc_ref[...] = partial          # init with first partial (no zero store)

        @pl.when(k != 0)
        def _():
            acc_ref[...] += partial

        @pl.when(k == pl.num_programs(2) - 1)
        def _():
            _epilogue(acc_ref[...], b_ref, act_fn, o_ref)

    return kernel


# ------------------------------- wrapper -------------------------------------

def _round_up(x, m):
    return (x + m - 1) // m * m


def _pick_tile(dim, target, align):
    """Tile ~= ceil(dim / n_tiles) rounded to `align`, minimizing padding."""
    n_tiles = max(1, pl.cdiv(dim, target))
    tile = _round_up(pl.cdiv(dim, n_tiles), align)
    return min(tile, _round_up(dim, align))


def fused_linear(x, weight, bias=None, activation=None, out_dtype=jnp.bfloat16):
    """y = activation(x @ weight.T + bias), computed in a Pallas TPU kernel.

    x:      [..., in_features]
    weight: [out_features, in_features]   (torch.nn.Linear layout, NOT transposed)
    bias:   [out_features] or None

    Compute is bf16 on the MXU with f32 accumulation (mirrors the Triton path's
    fp16 cast); output dtype defaults to bf16.
    """
    act_fn = _ACTIVATIONS[activation]
    has_bias = bias is not None

    out_features, in_features = weight.shape
    assert x.shape[-1] == in_features

    lead_shape = x.shape[:-1]
    M = math.prod(lead_shape) if lead_shape else 1
    K, N = in_features, out_features

    # bf16 operands for the MXU; bias stays f32 (tiny, added in the f32 epilogue).
    x2d = x.reshape(M, K).astype(jnp.bfloat16)
    w = weight.astype(jnp.bfloat16)                      # [N, K], no transpose

    # ---- tile selection (lane-aligned, padding-aware, VMEM-friendly) ----
    tm = _pick_tile(M, 512, 16)      # sublane axis of x / out (bf16 x -> mult of 16)
    tn = _pick_tile(N, 1024, 128)    # lane axis of out/bias, sublane of weight
    tk = _pick_tile(K, 512, 128)     # lane axis (contraction)

    # Megacore: if there would be a single parallel (M, N) block, split N so
    # both v7x TensorCores get work.
    if pl.cdiv(M, tm) * pl.cdiv(N, tn) < 2 and tn >= 256:
        tn = _round_up(tn // 2, 128)

    M_pad, N_pad, K_pad = _round_up(M, tm), _round_up(N, tn), _round_up(K, tk)

    if (M_pad, K_pad) != (M, K):
        x2d = jnp.pad(x2d, ((0, M_pad - M), (0, K_pad - K)))
    if (N_pad, K_pad) != (N, K):
        w = jnp.pad(w, ((0, N_pad - N), (0, K_pad - K)))

    n_m, n_n, n_k = M_pad // tm, N_pad // tn, K_pad // tk
    single_k = n_k == 1

    if single_k:
        kernel = _make_single_k_kernel(act_fn, has_bias)
        grid = (n_m, n_n)
        in_specs = [
            pl.BlockSpec((tm, tk), lambda i, j: (i, 0)),   # x tile
            pl.BlockSpec((tn, tk), lambda i, j: (j, 0)),   # weight tile ([N, K])
        ]
        b_spec = pl.BlockSpec((1, tn), lambda i, j: (0, j))
        out_spec = pl.BlockSpec((tm, tn), lambda i, j: (i, j))
        scratch = []
        semantics = ("parallel", "parallel")
        acc_bytes = 0
    else:
        kernel = _make_multi_k_kernel(act_fn, has_bias)
        grid = (n_m, n_n, n_k)
        in_specs = [
            pl.BlockSpec((tm, tk), lambda i, j, k: (i, k)),   # x tile
            pl.BlockSpec((tn, tk), lambda i, j, k: (j, k)),   # weight tile ([N, K])
        ]
        b_spec = pl.BlockSpec((1, tn), lambda i, j, k: (0, j))
        out_spec = pl.BlockSpec((tm, tn), lambda i, j, k: (i, j))
        scratch = [pltpu.VMEM((tm, tn), jnp.float32)]
        semantics = ("parallel", "parallel", "arbitrary")
        acc_bytes = tm * tn * 4

    operands = [x2d, w]
    if has_bias:
        b2d = bias.reshape(1, N).astype(jnp.float32)
        if N_pad != N:
            b2d = jnp.pad(b2d, ((0, 0), (0, N_pad - N)))
        operands.append(b2d)
        in_specs.append(b_spec)

    # Explicit VMEM budget: double-buffered bf16 x/w tiles + output tile + bias
    # + f32 accumulator, with headroom; capped below v7x's 64 MiB physical VMEM.
    out_bytes = np.dtype(out_dtype).itemsize
    needed = (2 * (tm * tk + tn * tk) * 2          # double-buffered bf16 x / w tiles
              + 2 * tm * tn * out_bytes            # double-buffered output tile
              + acc_bytes                          # f32 accumulator (multi-K only)
              + 2 * tn * 4)                        # bias
    vmem_limit = int(min(max(2 * needed, 32 * 1024 * 1024), 48 * 1024 * 1024))

    out = pl.pallas_call(
        kernel,
        out_shape=jax.ShapeDtypeStruct((M_pad, N_pad), out_dtype),
        grid_spec=pltpu.PrefetchScalarGridSpec(
            num_scalar_prefetch=0,
            grid=grid,
            in_specs=in_specs,
            out_specs=out_spec,
            scratch_shapes=scratch,
        ),
        compiler_params=pltpu.CompilerParams(
            dimension_semantics=semantics,
            vmem_limit_bytes=vmem_limit,
        ),
    )(*operands)

    if (M_pad, N_pad) != (M, N):
        out = out[:M, :N]
    return out.reshape(*lead_shape, N)


# --------------------------- parameter init ----------------------------------

def init_fused_linear_params(key, in_features, out_features, use_bias=True):
    """Deterministic init mirroring FusedLinear.reset_parameters():
    kaiming_uniform_(a=sqrt(5))  ==  U(-1/sqrt(fan_in), 1/sqrt(fan_in))."""
    kw, kb = jax.random.split(key)
    bound = 1.0 / math.sqrt(in_features)
    weight = jax.random.uniform(
        kw, (out_features, in_features), jnp.float32, -bound, bound
    )
    bias = None
    if use_bias:
        bias = jax.random.uniform(kb, (out_features,), jnp.float32, -bound, bound)
    return weight, bias


# --------------------------------- main ---------------------------------------

if __name__ == "__main__":
    key = jax.random.PRNGKey(0)
    k_x, k_p = jax.random.split(key)

    batch, seq, in_features, out_features = 2, 8, 32, 64
    x = jax.random.normal(k_x, (batch, seq, in_features), jnp.float32)

    weight, bias = init_fused_linear_params(k_p, in_features, out_features, use_bias=True)

    # FusedLinear with bias=True, activation=GeLU (the "fused" hot path).
    y = fused_linear(x, weight, bias, activation="gelu")
    y = jax.block_until_ready(y)
    assert y.shape == (batch, seq, out_features)
    assert y.dtype == jnp.bfloat16

    # Reference in f32 on bf16-rounded operands (matches the kernel's bf16 MXU
    # path, analogous to the Triton fp16 cast_inputs semantics).
    xb = x.astype(jnp.bfloat16).astype(jnp.float32)
    wb = weight.astype(jnp.bfloat16).astype(jnp.float32)
    y_ref = _gelu(jnp.einsum("bsk,nk->bsn", xb, wb) + bias)
    assert jnp.allclose(y.astype(jnp.float32), y_ref, atol=3e-2, rtol=3e-2), \
        "mismatch vs reference (gelu + bias)"

    # Module defaults (bias=False, activation=None); request f32 output here.
    y0 = jax.block_until_ready(
        fused_linear(x, weight, None, activation=None, out_dtype=jnp.float32)
    )
    y0_ref = jnp.einsum("bsk,nk->bsn", xb, wb)
    assert jnp.allclose(y0, y0_ref, atol=3e-2, rtol=3e-2), "mismatch (no bias/act)"

    # Exercise the multi-K (accumulator) path once with a larger K, against XLA.
    Kbig = 1536
    xk = jax.random.normal(k_x, (4, 64, Kbig), jnp.bfloat16)
    wk, bk = init_fused_linear_params(k_p, Kbig, 256, use_bias=True)
    yk = jax.block_until_ready(fused_linear(xk, wk, bk, activation="relu"))
    yk_ref = _relu(jnp.einsum("bsk,nk->bsn",
                              xk.astype(jnp.float32),
                              wk.astype(jnp.bfloat16).astype(jnp.float32)) + bk)
    assert jnp.allclose(yk.astype(jnp.float32), yk_ref, atol=5e-2, rtol=5e-2), \
        "mismatch (multi-K path)"

    # TODO(synk): backward pass (fused_matmul_backward) not implemented; forward only.
    print("KERNEL_OK")
</pallas_src>

<mosaic_0001>
module attributes {stable_mosaic.version = 11 : i64} {
  func.func @kernel(%arg0: i32, %arg1: i32, %arg2: memref<16x128xbf16, #tpu.memory_space<vmem>>, %arg3: memref<128x128xbf16, #tpu.memory_space<vmem>>, %arg4: memref<1x128xf32, #tpu.memory_space<vmem>>, %arg5: memref<16x128xbf16, #tpu.memory_space<vmem>>) attributes {dimension_semantics = [#tpu.dimension_semantics<parallel>, #tpu.dimension_semantics<parallel>], iteration_bounds = array<i64: 1, 1>, scalar_prefetch = 0 : i64, scratch_operands = 0 : i64, tpu.core_type = #tpu.core_type<tc>, window_params = [{transform_indices = @transform_0, window_bounds = array<i64: 16, 128>}, {transform_indices = @transform_1, window_bounds = array<i64: 128, 128>}, {transform_indices = @transform_2, window_bounds = array<i64: 1, 128>}, {transform_indices = @transform_3, window_bounds = array<i64: 16, 128>}]} {
    %c0 = arith.constant 0 : index
    %c0_0 = arith.constant 0 : index
    %0 = vector.load %arg2[%c0, %c0_0] : memref<16x128xbf16, #tpu.memory_space<vmem>>, vector<16x128xbf16>
    %c0_1 = arith.constant 0 : index
    %c0_2 = arith.constant 0 : index
    %1 = vector.load %arg3[%c0_1, %c0_2] : memref<128x128xbf16, #tpu.memory_space<vmem>>, vector<128x128xbf16>
    %cst = arith.constant dense<0.000000e+00> : vector<16x128xf32>
    %2 = tpu.matmul %0, %1, %cst {dimension_numbers = #tpu.dot_dimension_numbers<[1], [1], [0], [0], [0, 0, 1, 0], [], []>} : vector<16x128xbf16>, vector<128x128xbf16>, vector<16x128xf32> -> vector<16x128xf32>
    %c0_3 = arith.constant 0 : index
    %c0_4 = arith.constant 0 : index
    %3 = vector.load %arg4[%c0_3, %c0_4] : memref<1x128xf32, #tpu.memory_space<vmem>>, vector<1x128xf32>
    %4 = vector.broadcast %3 : vector<1x128xf32> to vector<16x128xf32>
    %5 = arith.addf %2, %4 : vector<16x128xf32>
    %cst_5 = arith.constant 5.000000e-01 : f32
    %6 = vector.broadcast %cst_5 : f32 to vector<16x128xf32>
    %7 = arith.mulf %6, %5 : vector<16x128xf32>
    %cst_6 = arith.constant 4.471500e-02 : f32
    %8 = vector.broadcast %cst_6 : f32 to vector<16x128xf32>
    %9 = arith.mulf %8, %5 : vector<16x128xf32>
    %10 = arith.mulf %9, %5 : vector<16x128xf32>
    %11 = arith.mulf %10, %5 : vector<16x128xf32>
    %12 = arith.addf %5, %11 : vector<16x128xf32>
    %cst_7 = arith.constant 0.797884583 : f32
    %13 = vector.broadcast %cst_7 : f32 to vector<16x128xf32>
    %14 = arith.mulf %13, %12 : vector<16x128xf32>
    %15 = math.tanh %14 : vector<16x128xf32>
    %cst_8 = arith.constant 1.000000e+00 : f32
    %16 = vector.broadcast %cst_8 : f32 to vector<16x128xf32>
    %17 = arith.addf %16, %15 : vector<16x128xf32>
    %18 = arith.mulf %7, %17 : vector<16x128xf32>
    %19 = arith.truncf %18 : vector<16x128xf32> to vector<16x128xbf16>
    %c0_9 = arith.constant 0 : index
    %c0_10 = arith.constant 0 : index
    %20 = vector.load %arg5[%c0_9, %c0_10] : memref<16x128xbf16, #tpu.memory_space<vmem>>, vector<16x128xbf16>
    tpu.vector_store %arg5[%c0_9, %c0_10], %19 {strides = array<i32>} : memref<16x128xbf16, #tpu.memory_space<vmem>>, vector<16x128xbf16>,
    return
  }
  func.func @transform_0(%arg0: i32, %arg1: i32) -> (i32, i32) {
    %c0_i32 = arith.constant 0 : i32
    %c0_i32_0 = arith.constant 0 : i32
    return %arg0, %c0_i32 : i32, i32
  }
  func.func @transform_1(%arg0: i32, %arg1: i32) -> (i32, i32) {
    %c0_i32 = arith.constant 0 : i32
    %c0_i32_0 = arith.constant 0 : i32
    return %arg1, %c0_i32 : i32, i32
  }
  func.func @transform_2(%arg0: i32, %arg1: i32) -> (i32, i32) {
    %c0_i32 = arith.constant 0 : i32
    %c0_i32_0 = arith.constant 0 : i32
    return %c0_i32, %arg1 : i32, i32
  }
  func.func @transform_3(%arg0: i32, %arg1: i32) -> (i32, i32) {
    %c0_i32 = arith.constant 0 : i32
    return %arg0, %arg1 : i32, i32
  }
}

</mosaic_0001>

<llo_original>
// kernel: tpu_custom_call.1
$region0: #{tpu_custom_call.1}
  #allocation0 [shape = 'u32[]', space=smem, size = 0x4, offset = 0x4, fixed_abs, tag = 'smem constant byte address 0x4 - core index']
  #allocation1 [shape = 'u32[144,128]{1,0:T(1,128)}', space=vmem, size = 0x12000, scoped, tag = 'internal scratch']
  %s0 = inlined_call_operand.hbm [shape: bf16[16,128], index: 0, kind: input, shape index: {}]
  %s1 = inlined_call_operand.hbm [shape: bf16[128,128], index: 1, kind: input, shape index: {}]
  %s2 = inlined_call_operand.vmem [shape: f32[1,128], index: 2, kind: input, shape index: {}]
  %s3 = inlined_call_operand.hbm [shape: bf16[16,128], index: 3, kind: output, shape index: {}]
  %s4 = sld [smem:[#allocation0]]
  $region30: #{tpu_custom_call.1} parent=0
    _
  %s6 = ssub.s32 1, %s4
  %s7 = scalar_select 0, %s6, %s4
  $region1: #{tpu_custom_call.1} parent=0
    #allocation2 [shape = 'u8[4096]{0}', space=vmem, size = 0x1000, scoped, tag = 'input window, operand 0, single buffered']
    #allocation3 [shape = 's32[1]{0}', space=sflag, size = 0x4, scoped, tag = 'scoped memory for tpu_custom_call.1']
    #allocation4 [shape = 's32[1]{0}', space=sflag, size = 0x4, scoped, tag = 'scoped memory for tpu_custom_call.1']
    #allocation5 [shape = 'u8[32768]{0}', space=vmem, size = 0x8000, scoped, tag = 'input window, operand 1, single buffered']
    #allocation6 [shape = 's32[1]{0}', space=sflag, size = 0x4, scoped, tag = 'scoped memory for tpu_custom_call.1']
    #allocation7 [shape = 'u8[4096]{0}', space=vmem, size = 0x1000, scoped, tag = 'output window, operand 0, single buffered']
    %8 = vsyncpa [#allocation3], 0
    %9 = vsyncpa [#allocation6], 0
    %10 = vsyncpa [#allocation4], 0
    // Predicated region
    $region2: #{tpu_custom_call.1} parent=1 // pred_check
      _
    $region3: #{tpu_custom_call.1} parent=1 // pred_check_branch
      %12 = sbr.rel (0) target = $region5
    $region4: #{tpu_custom_call.1} parent=1 // pred_region
      %s14 = ssub.s32 128, 128
      %15 = vsyncadd [#allocation3], %s14
      %s16 = sshll.u32 [#allocation2], 4
      %s17 = int_to_ptr.vmem [resolvable:$true] %s16
      %22 = dma.hbm_to_vmem [thread:$0]  %s0, 128, %s17, [#allocation3], 64, 64, 4
    $region5: #{tpu_custom_call.1} parent=1 // pred_fallthru
      _
    // Predicated region
    $region6: #{tpu_custom_call.1} parent=1 // pred_check
      _
    $region7: #{tpu_custom_call.1} parent=1 // pred_check_branch
      %24 = sbr.rel (0) target = $region9
    $region8: #{tpu_custom_call.1} parent=1 // pred_region
      %s26 = ssub.s32 1024, 1024
      %27 = vsyncadd [#allocation6], %s26
      %s28 = sshll.u32 [#allocation5], 4
      %s29 = int_to_ptr.vmem [resolvable:$true] %s28
      %34 = dma.hbm_to_vmem [thread:$0]  %s1, 1024, %s29, [#allocation6], 64, 64, 4
    $region9: #{tpu_custom_call.1} parent=1 // pred_fallthru
      _
    // Predicated region
    $region10: #{tpu_custom_call.1} parent=1 // pred_check
      _
    $region11: #{tpu_custom_call.1} parent=1 // pred_check_branch
      %36 = sbr.rel (0) target = $region13
    $region12: #{tpu_custom_call.1} parent=1 // pred_region
      _
    $region13: #{tpu_custom_call.1} parent=1 // pred_fallthru
      _
    // Predicated region
    $region14: #{tpu_custom_call.1} parent=1 // pred_check
      _
    $region15: #{tpu_custom_call.1} parent=1 // pred_check_branch
      %38 = sbr.rel (0) target = $region17
    $region16: #{tpu_custom_call.1} parent=1 // pred_region
      %39 = dma.done [#allocation3], 128
    $region17: #{tpu_custom_call.1} parent=1 // pred_fallthru
      _
    // Predicated region
    $region18: #{tpu_custom_call.1} parent=1 // pred_check
      _
    $region19: #{tpu_custom_call.1} parent=1 // pred_check_branch
      %41 = sbr.rel (0) target = $region21
    $region20: #{tpu_custom_call.1} parent=1 // pred_region
      %42 = dma.done [#allocation6], 1024
    $region21: #{tpu_custom_call.1} parent=1 // pred_fallthru
      _
    %v44 = vld [vmem:[#allocation2] sm:$0xf]
    %v45 = vld [vmem:[#allocation2 + $0x4] sm:$0xf]
    %v46 = vld [vmem:[#allocation5] sm:$0xf]
    %v47 = vld [vmem:[#allocation5 + $0x4] sm:$0xf]
    %v48 = vld [vmem:[#allocation5 + $0x8] sm:$0xf]
    %v49 = vld [vmem:[#allocation5 + $0xc] sm:$0xf]
    %v50 = vld [vmem:[#allocation5 + $0x10] sm:$0xf]
    %v51 = vld [vmem:[#allocation5 + $0x14] sm:$0xf]
    %v52 = vld [vmem:[#allocation5 + $0x18] sm:$0xf]
    %v53 = vld [vmem:[#allocation5 + $0x1c] sm:$0xf]
    %v54 = vld [vmem:[#allocation5 + $0x20] sm:$0xf]
    %v55 = vld [vmem:[#allocation5 + $0x24] sm:$0xf]
    %v56 = vld [vmem:[#allocation5 + $0x28] sm:$0xf]
    %v57 = vld [vmem:[#allocation5 + $0x2c] sm:$0xf]
    %v58 = vld [vmem:[#allocation5 + $0x30] sm:$0xf]
    %v59 = vld [vmem:[#allocation5 + $0x34] sm:$0xf]
    %v60 = vld [vmem:[#allocation5 + $0x38] sm:$0xf]
    %v61 = vld [vmem:[#allocation5 + $0x3c] sm:$0xf]
    %v62 = vld [vmem:[%s2] sm:$0x1]
    %v64 = vlaneseq
    %v65 = vshrl.u32 %v64, 7
    %v66 = vsub.s32 0, %v65
    %v67 = vrot.slane %v62, %v66
    %v71 = vunpack.c.l.b16 %v44
    %v72 = vunpack.c.l.b16 %v45
    %v73 = vpack.c.b16 %v72, %v71
    %v91 = vunpack.c.l.b16 %v46
    %v92 = vunpack.c.l.b16 %v47
    %v93 = vunpack.c.l.b16 %v48
    %v94 = vunpack.c.l.b16 %v49
    %v95 = vunpack.c.l.b16 %v50
    %v96 = vunpack.c.l.b16 %v51
    %v97 = vunpack.c.l.b16 %v52
    %v98 = vunpack.c.l.b16 %v53
    %v99 = vunpack.c.l.b16 %v54
    %v100 = vunpack.c.l.b16 %v55
    %v101 = vunpack.c.l.b16 %v56
    %v102 = vunpack.c.l.b16 %v57
    %v103 = vunpack.c.l.b16 %v58
    %v104 = vunpack.c.l.b16 %v59
    %v105 = vunpack.c.l.b16 %v60
    %v106 = vunpack.c.l.b16 %v61
    %v107 = vpack.c.b16 %v92, %v91
    %v108 = vpack.c.b16 %v94, %v93
    %v109 = vpack.c.b16 %v96, %v95
    %v110 = vpack.c.b16 %v98, %v97
    %v111 = vpack.c.b16 %v100, %v99
    %v112 = vpack.c.b16 %v102, %v101
    %v113 = vpack.c.b16 %v104, %v103
    %v114 = vpack.c.b16 %v106, %v105
    %123 = vmatprep.subr.bf16.mxu0 0
    %124 = vmatpush1.bf16.xpose.msra.mxu0 %v107
    %125 = vmatprep.subr.bf16.mxu0 0
    %126 = vmatpush1.bf16.xpose.msra.mxu0 %v108
    %127 = vmatprep.subr.bf16.mxu0 0
    %128 = vmatpush1.bf16.xpose.msra.mxu0 %v109
    %129 = vmatprep.subr.bf16.mxu0 0
    %130 = vmatpush1.bf16.xpose.msra.mxu0 %v110
    %131 = vmatprep.subr.bf16.mxu0 0
    %132 = vmatpush1.bf16.xpose.msra.mxu0 %v111
    %133 = vmatprep.subr.bf16.mxu0 0
    %134 = vmatpush1.bf16.xpose.msra.mxu0 %v112
    %135 = vmatprep.subr.bf16.mxu0 0
    %136 = vmatpush1.bf16.xpose.msra.mxu0 %v113
    %137 = vmatprep.subr.bf16.mxu0 0
    %138 = vmatpush1.bf16.xpose.msra.mxu0 %v114
    %139 = vmatprep.subr.bf16.mxu0 0
    %140 = vmatpush1.bf16.xpose.msra.mxu0 0
    %141 = vmatprep.subr.bf16.mxu0 0
    %142 = vmatpush1.bf16.xpose.msra.mxu0 0
    %143 = vmatprep.subr.bf16.mxu0 0
    %144 = vmatpush1.bf16.xpose.msra.mxu0 0
    %145 = vmatprep.subr.bf16.mxu0 0
    %146 = vmatpush1.bf16.xpose.msra.mxu0 0
    %147 = vmatprep.subr.bf16.mxu0 0
    %148 = vmatpush1.bf16.xpose.msra.mxu0 0
    %149 = vmatprep.subr.bf16.mxu0 0
    %150 = vmatpush1.bf16.xpose.msra.mxu0 0
    %151 = vmatprep.subr.bf16.mxu0 0
    %152 = vmatpush1.bf16.xpose.msra.mxu0 0
    %153 = vmatprep.subr.bf16.mxu0 0
    %154 = vmatpush1.bf16.xpose.msra.mxu0 0
    %155 = vmatprep.mubr.bf16.mxu0 0
    %156 = vmatmul.mubr.bf16.gmra.mrb[0].mxu0 %v73
    %v157 = vpop.f32.mrb[0].mxu0
    %v158 = vadd.f32 %v67, %v157
    %v159 = vpop.f32.mrb[0].mxu0
    %v160 = vpop.f32.mrb[0].mxu0
    %v161 = vadd.f32 %v67, %v160
    %v162 = vpop.f32.mrb[0].mxu0
    %163 = vdwg.mxu0
    %v164 = vmul.f32 %v158, 0.5
    %v165 = vmul.f32 %v161, 0.5
    %v166 = vmul.f32 %v158, 0.044715
    %v167 = vmul.f32 %v161, 0.044715
    %v168 = vmul.f32 %v166, %v158
    %v169 = vmul.f32 %v167, %v161
    %v170 = vmul.f32 %v168, %v158
    %v171 = vmul.f32 %v169, %v161
    %v172 = vadd.f32 %v158, %v170
    %v173 = vadd.f32 %v161, %v171
    %v174 = vmul.f32 %v172, 0.7978846
    %v175 = vmul.f32 %v173, 0.7978846
    %v176 = vtanh.pop %v174
    %v177 = vtanh.pop %v175
    %v178 = vadd.f32 %v176, 1.0
    %v179 = vadd.f32 %v177, 1.0
    %v180 = vmul.f32 %v164, %v178
    %v181 = vmul.f32 %v165, %v179
    %v182 = vpack.c.bf16 %v181, %v180
    %v184 = vunpack.c.l.b16 %v182
    %v185 = vunpack.c.h.b16 %v182
    %v186 = vpack.c.b16 %v184, %v184
    %v187 = vpack.c.b16 %v185, %v185
    %190 = vst [vmem:[#allocation7] sm:$0xf] %v186
    %191 = vst [vmem:[#allocation7 + $0x4] sm:$0xf] %v187
    // Predicated region
    $region22: #{tpu_custom_call.1} parent=1 // pred_check
      _
    $region23: #{tpu_custom_call.1} parent=1 // pred_check_branch
      %193 = sbr.rel (0) target = $region25
    $region24: #{tpu_custom_call.1} parent=1 // pred_region
      %s195 = ssub.s32 128, 128
      %196 = vsyncadd [#allocation4], %s195
      %s197 = sshll.u32 [#allocation7], 4
      %s198 = int_to_ptr.vmem [resolvable:$true] %s197
      %203 = dma.vmem_to_hbm [thread:$0]  %s198, 128, %s3, [#allocation4], 64, 64, 4
    $region25: #{tpu_custom_call.1} parent=1 // pred_fallthru
      _
    // Predicated region
    $region26: #{tpu_custom_call.1} parent=1 // pred_check
      _
    $region27: #{tpu_custom_call.1} parent=1 // pred_check_branch
      %205 = sbr.rel (0) target = $region29
    $region28: #{tpu_custom_call.1} parent=1 // pred_region
      %206 = dma.done [#allocation4], 128
    $region29: #{tpu_custom_call.1} parent=1 // pred_fallthru
      _
    %207 = vsyncpa [#allocation3], 1
    %208 = vsyncpa [#allocation6], 1
    %209 = vsyncpa [#allocation4], 1

</llo_original>
